<compile_context>
chip_gen: v7x
topology: tpu7x:2x2x1
jax: 0.10.0
libtpu: 0.0.40
codegen_flags: <defaults>
</compile_context>

<pallas_src>
import jax
import jax.numpy as jnp
from jax.experimental import pallas as pl
from jax.experimental.pallas import tpu as pltpu


def _critic_kernel(x_ref, w1_ref, b1_ref, w2_ref, b2_ref, w3_ref, b3_ref, o_ref):
    """Fused 3-layer MLP on one batch tile, feature-major (features x batch)."""
    x = x_ref[...]            # (2, TB)   batch on the lane axis
    w1 = w1_ref[...]          # (H, 2)

    # Layer 1 (K=2): VPU broadcast-muls instead of a 2-wide MXU contraction.
    h1 = jnp.tanh(
        w1[:, 0:1] * x[0:1, :] + w1[:, 1:2] * x[1:2, :] + b1_ref[...]
    )                                                                   # (H, TB)

    # Layer 2: (H,H) @ (H,TB) on the MXU, f32 accumulate; tanh goes to the EUP.
    h2 = jnp.tanh(
        jnp.dot(w2_ref[...], h1, preferred_element_type=jnp.float32) + b2_ref[...]
    )                                                                   # (H, TB)

    # Layer 3 (single output unit): lane-dense (1, TB) result via a sublane
    # reduce on the XLU — avoids a 1-wide MXU output tile / masked stores.
    o_ref[...] = jnp.sum(h2 * w3_ref[...], axis=0, keepdims=True) + b3_ref[...]


def _pick_batch_tile(B, target=512):
    # 512-lane tiles when possible (>=85% of HBM roofline per the reference),
    # 128-lane otherwise, single full-array tile for small/odd batches.
    if B % target == 0:
        return target
    if B % 128 == 0:
        return 128
    return B


def critic_forward(state, params):
    """state: (B, 2) float32.  Returns (B,) float32 — matches value.squeeze(dim=1)."""
    w1t, b1, w2t, b2, w3c, b3 = params
    B = state.shape[0]
    tb = _pick_batch_tile(B)

    # Feature-major layout: batch on the lane axis.  Layout plumbing in the
    # wrapper (a (B,2)->(2,B) transpose) is free relative to the kernel.
    x_t = state.T  # (2, B)

    full = lambda arr: pl.BlockSpec(arr.shape, lambda i: (0, 0))  # weights stay resident

    out = pl.pallas_call(
        _critic_kernel,
        out_shape=jax.ShapeDtypeStruct((1, B), jnp.float32),
        grid=(B // tb,),
        in_specs=[
            pl.BlockSpec((2, tb), lambda i: (0, i)),   # state tile, lane-dense
            full(w1t), full(b1),
            full(w2t), full(b2),
            full(w3c), full(b3),
        ],
        out_specs=pl.BlockSpec((1, tb), lambda i: (0, i)),  # lane-dense output slab
        compiler_params=pltpu.CompilerParams(
            # Batch tiles are independent -> shard across v7x's two TCs
            # (harmless no-op on single-TC v5e/v6e).
            dimension_semantics=("parallel",),
        ),
    )(x_t, w1t, b1, w2t, b2, w3c, b3)

    return out[0]  # (1, B) -> (B,) == squeeze(dim=1)


def init_critic_params(hidden_size, in_dim=2, key=jax.random.PRNGKey(42)):
    """Deterministic synthetic init (PyTorch-Linear-style uniform fan-in bounds),
    stored directly in the layouts the kernel consumes."""
    ks = jax.random.split(key, 6)

    def uni(k, shape, fan_in):
        bound = 1.0 / float(fan_in) ** 0.5
        return jax.random.uniform(k, shape, jnp.float32, -bound, bound)

    w1t = uni(ks[0], (hidden_size, in_dim), in_dim)            # (H, 2)  == torch (out, in)
    b1 = uni(ks[1], (hidden_size, 1), in_dim)                  # (H, 1)
    w2t = uni(ks[2], (hidden_size, hidden_size), hidden_size)  # (H, H)  == torch (out, in)
    b2 = uni(ks[3], (hidden_size, 1), hidden_size)             # (H, 1)
    w3c = uni(ks[4], (hidden_size, 1), hidden_size)            # (H, 1)  column vector
    b3 = uni(ks[5], (1, 1), hidden_size)                       # (1, 1)
    return (w1t, b1, w2t, b2, w3c, b3)


def critic_reference(state, params):
    """Pure-jnp reference in standard (batch, feature) layout."""
    w1t, b1, w2t, b2, w3c, b3 = params
    h1 = jnp.tanh(state @ w1t.T + b1[:, 0])
    h2 = jnp.tanh(h1 @ w2t.T + b2[:, 0])
    return (h2 @ w3c + b3[0])[:, 0]


if __name__ == "__main__":
    H = 32
    params = init_critic_params(H)

    # Small batch (single full-array tile path).
    state_small = jax.random.normal(jax.random.PRNGKey(0), (8, 2), dtype=jnp.float32)
    v_small = jax.block_until_ready(critic_forward(state_small, params))
    assert v_small.shape == (8,), v_small.shape
    ref_small = critic_reference(state_small, params)
    assert jnp.allclose(v_small, ref_small, atol=1e-5, rtol=1e-5), (v_small, ref_small)

    # Larger batch exercises the pipelined grid (2 x 512-lane tiles, parallel axis).
    state_big = jax.random.normal(jax.random.PRNGKey(1), (1024, 2), dtype=jnp.float32)
    v_big = jax.block_until_ready(critic_forward(state_big, params))
    assert v_big.shape == (1024,), v_big.shape
    ref_big = critic_reference(state_big, params)
    assert jnp.allclose(v_big, ref_big, atol=1e-5, rtol=1e-5)

    print("KERNEL_OK")
</pallas_src>

<mosaic_0001>
module attributes {stable_mosaic.version = 11 : i64} {
  func.func @_critic_kernel(%arg0: i32, %arg1: memref<2x8xf32, #tpu.memory_space<vmem>>, %arg2: memref<32x2xf32, #tpu.memory_space<vmem>>, %arg3: memref<32x1xf32, #tpu.memory_space<vmem>>, %arg4: memref<32x32xf32, #tpu.memory_space<vmem>>, %arg5: memref<32x1xf32, #tpu.memory_space<vmem>>, %arg6: memref<32x1xf32, #tpu.memory_space<vmem>>, %arg7: memref<1x1xf32, #tpu.memory_space<vmem>>, %arg8: memref<1x8xf32, #tpu.memory_space<vmem>>) attributes {dimension_semantics = [#tpu.dimension_semantics<parallel>], iteration_bounds = array<i64: 1>, scalar_prefetch = 0 : i64, scratch_operands = 0 : i64, tpu.core_type = #tpu.core_type<tc>, window_params = [{transform_indices = @transform_0, window_bounds = array<i64: 2, 8>}, {pipeline_mode = #tpu.pipeline_mode<synchronous>, transform_indices = @transform_1, window_bounds = array<i64: 32, 2>}, {pipeline_mode = #tpu.pipeline_mode<synchronous>, transform_indices = @transform_2, window_bounds = array<i64: 32, 1>}, {pipeline_mode = #tpu.pipeline_mode<synchronous>, transform_indices = @transform_3, window_bounds = array<i64: 32, 32>}, {pipeline_mode = #tpu.pipeline_mode<synchronous>, transform_indices = @transform_4, window_bounds = array<i64: 32, 1>}, {pipeline_mode = #tpu.pipeline_mode<synchronous>, transform_indices = @transform_5, window_bounds = array<i64: 32, 1>}, {pipeline_mode = #tpu.pipeline_mode<synchronous>, transform_indices = @transform_6, window_bounds = array<i64: 1, 1>}, {transform_indices = @transform_7, window_bounds = array<i64: 1, 8>}]} {
    %c0 = arith.constant 0 : index
    %c0_0 = arith.constant 0 : index
    %0 = vector.load %arg1[%c0, %c0_0] : memref<2x8xf32, #tpu.memory_space<vmem>>, vector<2x8xf32>
    %c0_1 = arith.constant 0 : index
    %c0_2 = arith.constant 0 : index
    %1 = vector.load %arg2[%c0_1, %c0_2] : memref<32x2xf32, #tpu.memory_space<vmem>>, vector<32x2xf32>
    %2 = vector.extract_strided_slice %1 {offsets = [0, 0], sizes = [32, 1], strides = [1, 1]} : vector<32x2xf32> to vector<32x1xf32>
    %3 = vector.extract_strided_slice %0 {offsets = [0, 0], sizes = [1, 8], strides = [1, 1]} : vector<2x8xf32> to vector<1x8xf32>
    %4 = vector.broadcast %2 : vector<32x1xf32> to vector<32x8xf32>
    %5 = vector.broadcast %3 : vector<1x8xf32> to vector<32x8xf32>
    %6 = arith.mulf %4, %5 : vector<32x8xf32>
    %7 = vector.extract_strided_slice %1 {offsets = [0, 1], sizes = [32, 1], strides = [1, 1]} : vector<32x2xf32> to vector<32x1xf32>
    %8 = vector.extract_strided_slice %0 {offsets = [1, 0], sizes = [1, 8], strides = [1, 1]} : vector<2x8xf32> to vector<1x8xf32>
    %9 = vector.broadcast %7 : vector<32x1xf32> to vector<32x8xf32>
    %10 = vector.broadcast %8 : vector<1x8xf32> to vector<32x8xf32>
    %11 = arith.mulf %9, %10 : vector<32x8xf32>
    %12 = arith.addf %6, %11 : vector<32x8xf32>
    %c0_3 = arith.constant 0 : index
    %c0_4 = arith.constant 0 : index
    %13 = vector.load %arg3[%c0_3, %c0_4] : memref<32x1xf32, #tpu.memory_space<vmem>>, vector<32x1xf32>
    %14 = vector.broadcast %13 : vector<32x1xf32> to vector<32x8xf32>
    %15 = arith.addf %12, %14 : vector<32x8xf32>
    %16 = math.tanh %15 : vector<32x8xf32>
    %c0_5 = arith.constant 0 : index
    %c0_6 = arith.constant 0 : index
    %17 = vector.load %arg4[%c0_5, %c0_6] : memref<32x32xf32, #tpu.memory_space<vmem>>, vector<32x32xf32>
    %cst = arith.constant dense<0.000000e+00> : vector<32x8xf32>
    %18 = tpu.matmul %17, %16, %cst {dimension_numbers = #tpu.dot_dimension_numbers<[1], [0], [0], [1], [0, 0, 1, 1], [], []>} : vector<32x32xf32>, vector<32x8xf32>, vector<32x8xf32> -> vector<32x8xf32>
    %c0_7 = arith.constant 0 : index
    %c0_8 = arith.constant 0 : index
    %19 = vector.load %arg5[%c0_7, %c0_8] : memref<32x1xf32, #tpu.memory_space<vmem>>, vector<32x1xf32>
    %20 = vector.broadcast %19 : vector<32x1xf32> to vector<32x8xf32>
    %21 = arith.addf %18, %20 : vector<32x8xf32>
    %22 = math.tanh %21 : vector<32x8xf32>
    %c0_9 = arith.constant 0 : index
    %c0_10 = arith.constant 0 : index
    %23 = vector.load %arg6[%c0_9, %c0_10] : memref<32x1xf32, #tpu.memory_space<vmem>>, vector<32x1xf32>
    %24 = vector.broadcast %23 : vector<32x1xf32> to vector<32x8xf32>
    %25 = arith.mulf %22, %24 : vector<32x8xf32>
    %cst_11 = arith.constant dense<0.000000e+00> : vector<8xf32>
    %26 = vector.multi_reduction <add>, %25, %cst_11 [0] : vector<32x8xf32> to vector<8xf32>
    %27 = vector.shape_cast %26 : vector<8xf32> to vector<1x8xf32>
    %c0_12 = arith.constant 0 : index
    %c0_13 = arith.constant 0 : index
    %28 = vector.load %arg7[%c0_12, %c0_13] : memref<1x1xf32, #tpu.memory_space<vmem>>, vector<1x1xf32>
    %29 = vector.broadcast %28 : vector<1x1xf32> to vector<1x8xf32>
    %30 = arith.addf %27, %29 : vector<1x8xf32>
    %c0_14 = arith.constant 0 : index
    %c0_15 = arith.constant 0 : index
    %31 = vector.load %arg8[%c0_14, %c0_15] : memref<1x8xf32, #tpu.memory_space<vmem>>, vector<1x8xf32>
    tpu.vector_store %arg8[%c0_14, %c0_15], %30 {strides = array<i32>} : memref<1x8xf32, #tpu.memory_space<vmem>>, vector<1x8xf32>,
    return
  }
  func.func @transform_0(%arg0: i32) -> (i32, i32) {
    %c0_i32 = arith.constant 0 : i32
    %c0_i32_0 = arith.constant 0 : i32
    return %c0_i32, %arg0 : i32, i32
  }
  func.func @transform_1(%arg0: i32) -> (i32, i32) {
    %c0_i32 = arith.constant 0 : i32
    %c0_i32_0 = arith.constant 0 : i32
    %c0_i32_1 = arith.constant 0 : i32
    return %c0_i32, %c0_i32_0 : i32, i32
  }
  func.func @transform_2(%arg0: i32) -> (i32, i32) {
    %c0_i32 = arith.constant 0 : i32
    %c0_i32_0 = arith.constant 0 : i32
    %c0_i32_1 = arith.constant 0 : i32
    return %c0_i32, %c0_i32_0 : i32, i32
  }
  func.func @transform_3(%arg0: i32) -> (i32, i32) {
    %c0_i32 = arith.constant 0 : i32
    %c0_i32_0 = arith.constant 0 : i32
    %c0_i32_1 = arith.constant 0 : i32
    return %c0_i32, %c0_i32_0 : i32, i32
  }
  func.func @transform_4(%arg0: i32) -> (i32, i32) {
    %c0_i32 = arith.constant 0 : i32
    %c0_i32_0 = arith.constant 0 : i32
    %c0_i32_1 = arith.constant 0 : i32
    return %c0_i32, %c0_i32_0 : i32, i32
  }
  func.func @transform_5(%arg0: i32) -> (i32, i32) {
    %c0_i32 = arith.constant 0 : i32
    %c0_i32_0 = arith.constant 0 : i32
    %c0_i32_1 = arith.constant 0 : i32
    return %c0_i32, %c0_i32_0 : i32, i32
  }
  func.func @transform_6(%arg0: i32) -> (i32, i32) {
    %c0_i32 = arith.constant 0 : i32
    %c0_i32_0 = arith.constant 0 : i32
    %c0_i32_1 = arith.constant 0 : i32
    return %c0_i32, %c0_i32_0 : i32, i32
  }
  func.func @transform_7(%arg0: i32) -> (i32, i32) {
    %c0_i32 = arith.constant 0 : i32
    %c0_i32_0 = arith.constant 0 : i32
    return %c0_i32, %arg0 : i32, i32
  }
}

</mosaic_0001>

<llo_original>
// kernel: tpu_custom_call.1
$region0: #{tpu_custom_call.1}
  #allocation0 [shape = 'u32[]', space=smem, size = 0x4, offset = 0x4, fixed_abs, tag = 'smem constant byte address 0x4 - core index']
  #allocation1 [shape = 'u32[144,128]{1,0:T(1,128)}', space=vmem, size = 0x12000, scoped, tag = 'internal scratch']
  #allocation2 [shape = 'f32[1,1]{1,0:T(1,128)S(1)}', space=vmem, size = 0x200, scoped, tag = 'scoped memory for tpu_custom_call.1']
  %s0 = inlined_call_operand.vmem [shape: f32[2,8], index: 0, kind: input, shape index: {}]
  %s1 = inlined_call_operand.vmem [shape: f32[32,2], index: 1, kind: input, shape index: {}]
  %s2 = inlined_call_operand.vmem [shape: f32[32,1], index: 2, kind: input, shape index: {}]
  %s3 = inlined_call_operand.vmem [shape: f32[32,32], index: 3, kind: input, shape index: {}]
  %s4 = inlined_call_operand.vmem [shape: f32[32,1], index: 4, kind: input, shape index: {}]
  %s5 = inlined_call_operand.vmem [shape: f32[32,1], index: 5, kind: input, shape index: {}]
  %s6 = inlined_call_operand.<no memory space> [shape: f32[1,1], index: 6, kind: input, shape index: {}]
  %s7 = inlined_call_operand.hbm [shape: f32[1,8], index: 7, kind: output, shape index: {}]
  %s8 = sld [smem:[#allocation0]]
  $region38: #{tpu_custom_call.1} parent=0
    _
  %s10 = ssub.s32 1, %s8
  %s11 = scalar_select 0, %s10, %s8
  %v12 = vstv %s6
  %13 = vst [vmem:[#allocation2] sm:$0x1] %v12
  $region1: #{tpu_custom_call.1} parent=0
    #allocation3 [shape = 'u8[512]{0}', space=vmem, size = 0x400, scoped, tag = 'output window, operand 0, single buffered']
    #allocation4 [shape = 's32[1]{0}', space=sflag, size = 0x4, scoped, tag = 'scoped memory for tpu_custom_call.1']
    %14 = vsyncpa [#allocation4], 0
    // Predicated region
    $region2: #{tpu_custom_call.1} parent=1 // pred_check
      _
    $region3: #{tpu_custom_call.1} parent=1 // pred_check_branch
      %16 = sbr.rel (0) target = $region5
    $region4: #{tpu_custom_call.1} parent=1 // pred_region
      _
    $region5: #{tpu_custom_call.1} parent=1 // pred_fallthru
      _
    // Predicated region
    $region6: #{tpu_custom_call.1} parent=1 // pred_check
      _
    $region7: #{tpu_custom_call.1} parent=1 // pred_check_branch
      %18 = sbr.rel (0) target = $region9
    $region8: #{tpu_custom_call.1} parent=1 // pred_region
      _
    $region9: #{tpu_custom_call.1} parent=1 // pred_fallthru
      _
    // Predicated region
    $region10: #{tpu_custom_call.1} parent=1 // pred_check
      _
    $region11: #{tpu_custom_call.1} parent=1 // pred_check_branch
      %20 = sbr.rel (0) target = $region13
    $region12: #{tpu_custom_call.1} parent=1 // pred_region
      _
    $region13: #{tpu_custom_call.1} parent=1 // pred_fallthru
      _
    // Predicated region
    $region14: #{tpu_custom_call.1} parent=1 // pred_check
      _
    $region15: #{tpu_custom_call.1} parent=1 // pred_check_branch
      %22 = sbr.rel (0) target = $region17
    $region16: #{tpu_custom_call.1} parent=1 // pred_region
      _
    $region17: #{tpu_custom_call.1} parent=1 // pred_fallthru
      _
    // Predicated region
    $region18: #{tpu_custom_call.1} parent=1 // pred_check
      _
    $region19: #{tpu_custom_call.1} parent=1 // pred_check_branch
      %24 = sbr.rel (0) target = $region21
    $region20: #{tpu_custom_call.1} parent=1 // pred_region
      _
    $region21: #{tpu_custom_call.1} parent=1 // pred_fallthru
      _
    // Predicated region
    $region22: #{tpu_custom_call.1} parent=1 // pred_check
      _
    $region23: #{tpu_custom_call.1} parent=1 // pred_check_branch
      %26 = sbr.rel (0) target = $region25
    $region24: #{tpu_custom_call.1} parent=1 // pred_region
      _
    $region25: #{tpu_custom_call.1} parent=1 // pred_fallthru
      _
    // Predicated region
    $region26: #{tpu_custom_call.1} parent=1 // pred_check
      _
    $region27: #{tpu_custom_call.1} parent=1 // pred_check_branch
      %28 = sbr.rel (0) target = $region29
    $region28: #{tpu_custom_call.1} parent=1 // pred_region
      _
    $region29: #{tpu_custom_call.1} parent=1 // pred_fallthru
      _
    %v29 = vld [vmem:[%s0] sm:$0x3]
    %v30 = vld [vmem:[%s1] sm:$0xff]
    %v31 = vld [vmem:[%s1 + $0x8] sm:$0xff]
    %v32 = vld [vmem:[%s1 + $0x10] sm:$0xff]
    %v33 = vld [vmem:[%s1 + $0x18] sm:$0xff]
    %35 = vset.pattern.permute.xlu0 0
    %36 = vperm.xlu0 %35, %v30
    %v37 = vpop.permute.xlu0 %36
    %40 = vset.pattern.permute.xlu0 0
    %41 = vperm.xlu0 %40, %v31
    %v42 = vpop.permute.xlu0 %41
    %45 = vset.pattern.permute.xlu0 0
    %46 = vperm.xlu0 %45, %v32
    %v47 = vpop.permute.xlu0 %46
    %50 = vset.pattern.permute.xlu0 0
    %51 = vperm.xlu0 %50, %v33
    %v52 = vpop.permute.xlu0 %51
    %v54 = vlaneseq
    %v55 = vshrl.u32 %v54, 7
    %v56 = vsub.s32 0, %v55
    %v57 = vrot.slane %v29, %v56
    %v58 = vmul.f32 %v37, %v57
    %v59 = vmul.f32 %v42, %v57
    %v60 = vmul.f32 %v47, %v57
    %v61 = vmul.f32 %v52, %v57
    %62 = vset.pattern.permute.xlu0 1
    %63 = vperm.xlu0 %62, %v30
    %v64 = vpop.permute.xlu0 %63
    %66 = vset.pattern.permute.xlu0 1
    %67 = vperm.xlu0 %66, %v31
    %v68 = vpop.permute.xlu0 %67
    %70 = vset.pattern.permute.xlu0 1
    %71 = vperm.xlu0 %70, %v32
    %v72 = vpop.permute.xlu0 %71
    %74 = vset.pattern.permute.xlu0 1
    %75 = vperm.xlu0 %74, %v33
    %v76 = vpop.permute.xlu0 %75
    %v78 = vlaneseq
    %v79 = vshrl.u32 %v78, 7
    %v80 = vsub.s32 1, %v79
    %v81 = vrot.slane %v29, %v80
    %v82 = vmul.f32 %v64, %v81
    %v83 = vmul.f32 %v68, %v81
    %v84 = vmul.f32 %v72, %v81
    %v85 = vmul.f32 %v76, %v81
    %v86 = vadd.f32 %v58, %v82
    %v87 = vadd.f32 %v59, %v83
    %v88 = vadd.f32 %v60, %v84
    %v89 = vadd.f32 %v61, %v85
    %v90 = vld [vmem:[%s2] sm:$0xff]
    %v91 = vld [vmem:[%s2 + $0x8] sm:$0xff]
    %v92 = vld [vmem:[%s2 + $0x10] sm:$0xff]
    %v93 = vld [vmem:[%s2 + $0x18] sm:$0xff]
    %95 = vset.pattern.permute.xlu0 0
    %96 = vperm.xlu0 %95, %v90
    %v97 = vpop.permute.xlu0 %96
    %100 = vset.pattern.permute.xlu0 0
    %101 = vperm.xlu0 %100, %v91
    %v102 = vpop.permute.xlu0 %101
    %105 = vset.pattern.permute.xlu0 0
    %106 = vperm.xlu0 %105, %v92
    %v107 = vpop.permute.xlu0 %106
    %110 = vset.pattern.permute.xlu0 0
    %111 = vperm.xlu0 %110, %v93
    %v112 = vpop.permute.xlu0 %111
    %v114 = vadd.f32 %v86, %v97
    %v115 = vadd.f32 %v87, %v102
    %v116 = vadd.f32 %v88, %v107
    %v117 = vadd.f32 %v89, %v112
    %v118 = vtanh.pop %v114
    %v119 = vtanh.pop %v115
    %v120 = vtanh.pop %v116
    %v121 = vtanh.pop %v117
    %v122 = vld [vmem:[%s3] sm:$0xff]
    %v123 = vld [vmem:[%s3 + $0x8] sm:$0xff]
    %v124 = vld [vmem:[%s3 + $0x10] sm:$0xff]
    %v125 = vld [vmem:[%s3 + $0x18] sm:$0xff]
    %v126 = vld [vmem:[%s4] sm:$0xff]
    %v127 = vld [vmem:[%s4 + $0x8] sm:$0xff]
    %v128 = vld [vmem:[%s4 + $0x10] sm:$0xff]
    %v129 = vld [vmem:[%s4 + $0x18] sm:$0xff]
    %131 = vset.pattern.permute.xlu0 0
    %132 = vperm.xlu0 %131, %v126
    %v133 = vpop.permute.xlu0 %132
    %136 = vset.pattern.permute.xlu0 0
    %137 = vperm.xlu0 %136, %v127
    %v138 = vpop.permute.xlu0 %137
    %141 = vset.pattern.permute.xlu0 0
    %142 = vperm.xlu0 %141, %v128
    %v143 = vpop.permute.xlu0 %142
    %146 = vset.pattern.permute.xlu0 0
    %147 = vperm.xlu0 %146, %v129
    %v148 = vpop.permute.xlu0 %147
    %vm150 = vcmask 261120
    %v152 = vsel %vm150, %v122, 0
    %v155 = vsel %vm150, %v123, 0
    %v158 = vsel %vm150, %v124, 0
    %v161 = vsel %vm150, %v125, 0
    %163 = vmatprep.subr.mxu0 0.0
    %164 = vmatpush1.msra.mxu0 %v118
    %165 = vmatprep.subr.mxu0 0.0
    %166 = vmatpush1.msra.mxu0 %v119
    %167 = vmatprep.subr.mxu0 0.0
    %168 = vmatpush1.msra.mxu0 %v120
    %169 = vmatprep.subr.mxu0 0.0
    %170 = vmatpush1.msra.mxu0 %v121
    %171 = vmatprep.subr.mxu0 0.0
    %172 = vmatpush1.msra.mxu0 0.0
    %173 = vmatprep.subr.mxu0 0.0
    %174 = vmatpush1.msra.mxu0 0.0
    %175 = vmatprep.subr.mxu0 0.0
    %176 = vmatpush1.msra.mxu0 0.0
    %177 = vmatprep.subr.mxu0 0.0
    %178 = vmatpush1.msra.mxu0 0.0
    %179 = vmatprep.subr.mxu0 0.0
    %180 = vmatpush1.msra.mxu0 0.0
    %181 = vmatprep.subr.mxu0 0.0
    %182 = vmatpush1.msra.mxu0 0.0
    %183 = vmatprep.subr.mxu0 0.0
    %184 = vmatpush1.msra.mxu0 0.0
    %185 = vmatprep.subr.mxu0 0.0
    %186 = vmatpush1.msra.mxu0 0.0
    %187 = vmatprep.subr.mxu0 0.0
    %188 = vmatpush1.msra.mxu0 0.0
    %189 = vmatprep.subr.mxu0 0.0
    %190 = vmatpush1.msra.mxu0 0.0
    %191 = vmatprep.subr.mxu0 0.0
    %192 = vmatpush1.msra.mxu0 0.0
    %193 = vmatprep.subr.mxu0 0.0
    %194 = vmatpush1.msra.mxu0 0.0
    %195 = vmatprep.subr.mxu0 0.0
    %196 = vmatpush1.msra.mxu0 0.0
    %197 = vmatprep.subr.mxu0 0.0
    %198 = vmatpush1.msra.mxu0 0.0
    %199 = vmatprep.subr.mxu0 0.0
    %200 = vmatpush1.msra.mxu0 0.0
    %201 = vmatprep.subr.mxu0 0.0
    %202 = vmatpush1.msra.mxu0 0.0
    %203 = vmatprep.subr.mxu0 0.0
    %204 = vmatpush1.msra.mxu0 0.0
    %205 = vmatprep.subr.mxu0 0.0
    %206 = vmatpush1.msra.mxu0 0.0
    %207 = vmatprep.subr.mxu0 0.0
    %208 = vmatpush1.msra.mxu0 0.0
    %209 = vmatprep.subr.mxu0 0.0
    %210 = vmatpush1.msra.mxu0 0.0
    %211 = vmatprep.subr.mxu0 0.0
    %212 = vmatpush1.msra.mxu0 0.0
    %213 = vmatprep.subr.mxu0 0.0
    %214 = vmatpush1.msra.mxu0 0.0
    %215 = vmatprep.subr.mxu0 0.0
    %216 = vmatpush1.msra.mxu0 0.0
    %217 = vmatprep.subr.mxu0 0.0
    %218 = vmatpush1.msra.mxu0 0.0
    %219 = vmatprep.subr.mxu0 0.0
    %220 = vmatpush1.msra.mxu0 0.0
    %221 = vmatprep.subr.mxu0 0.0
    %222 = vmatpush1.msra.mxu0 0.0
    %223 = vmatprep.subr.mxu0 0.0
    %224 = vmatpush1.msra.mxu0 0.0
    %225 = vmatprep.subr.mxu0 0.0
    %226 = vmatpush1.msra.mxu0 0.0
    %227 = vmatprep.mubr.f32.mxu0 0.0
    %228 = vmatmul.mubr.f32.gmra.mrb[0].mxu0 %v152
    %v229 = vpop.f32.mrb[0].mxu0
    %v230 = vadd.f32 %v133, %v229
    %v231 = vpop.f32.mrb[0].mxu0
    %232 = vmatprep.mubr.f32.mxu0 0.0
    %233 = vmatmul.mubr.f32.gmra.mrb[0].mxu0 %v155
    %v234 = vpop.f32.mrb[0].mxu0
    %v235 = vadd.f32 %v138, %v234
    %v236 = vpop.f32.mrb[0].mxu0
    %237 = vmatprep.mubr.f32.mxu0 0.0
    %238 = vmatmul.mubr.f32.gmra.mrb[0].mxu0 %v158
    %v239 = vpop.f32.mrb[0].mxu0
    %v240 = vadd.f32 %v143, %v239
    %v241 = vpop.f32.mrb[0].mxu0
    %242 = vmatprep.mubr.f32.mxu0 0.0
    %243 = vmatmul.mubr.f32.gmra.mrb[0].mxu0 %v161
    %v244 = vpop.f32.mrb[0].mxu0
    %v245 = vadd.f32 %v148, %v244
    %v246 = vpop.f32.mrb[0].mxu0
    %247 = vdwg.mxu0
    %v248 = vtanh.pop %v230
    %v249 = vtanh.pop %v235
    %v250 = vtanh.pop %v240
    %v251 = vtanh.pop %v245
    %v252 = vld [vmem:[%s5] sm:$0xff]
    %v253 = vld [vmem:[%s5 + $0x8] sm:$0xff]
    %v254 = vld [vmem:[%s5 + $0x10] sm:$0xff]
    %v255 = vld [vmem:[%s5 + $0x18] sm:$0xff]
    %257 = vset.pattern.permute.xlu0 0
    %258 = vperm.xlu0 %257, %v252
    %v259 = vpop.permute.xlu0 %258
    %262 = vset.pattern.permute.xlu0 0
    %263 = vperm.xlu0 %262, %v253
    %v264 = vpop.permute.xlu0 %263
    %267 = vset.pattern.permute.xlu0 0
    %268 = vperm.xlu0 %267, %v254
    %v269 = vpop.permute.xlu0 %268
    %272 = vset.pattern.permute.xlu0 0
    %273 = vperm.xlu0 %272, %v255
    %v274 = vpop.permute.xlu0 %273
    %v276 = vmul.f32 %v248, %v259
    %v277 = vmul.f32 %v249, %v264
    %v278 = vmul.f32 %v250, %v269
    %v279 = vmul.f32 %v251, %v274
    %vm280 = vcmask 64512
    %v281 = vsel %vm280, %v276, 0.0
    %v282 = vsel %vm280, %v277, 0.0
    %v283 = vadd.f32 %v281, %v282
    %v284 = vsel %vm280, %v278, 0.0
    %v285 = vadd.f32 %v283, %v284
    %v286 = vsel %vm280, %v279, 0.0
    %v287 = vadd.f32 %v285, %v286
    %v288 = vrot.slane %v287, 4
    %v289 = vadd.f32 %v287, %v288
    %v290 = vrot.slane %v289, 2
    %v291 = vadd.f32 %v289, %v290
    %v292 = vrot.slane %v291, 1
    %v293 = vadd.f32 %v291, %v292
    %v294 = vld [vmem:[#allocation2] sm:$0x1]
    %296 = vset.pattern.permute.xlu0 0
    %297 = vperm.xlu0 %296, %v294
    %v298 = vpop.permute.xlu0 %297
    %v300 = vlaneseq
    %v301 = vshrl.u32 %v300, 7
    %v302 = vsub.s32 0, %v301
    %v303 = vrot.slane %v298, %v302
    %v304 = vadd.f32 %v293, %v303
    %vm305 = vcmask 57344
    %306 = vst.msk [vmem:[#allocation3] sm:$0x1] %vm305, %v304
    // Predicated region
    $region30: #{tpu_custom_call.1} parent=1 // pred_check
      _
    $region31: #{tpu_custom_call.1} parent=1 // pred_check_branch
      %308 = sbr.rel (0) target = $region33
    $region32: #{tpu_custom_call.1} parent=1 // pred_region
      %s310 = ssub.s32 16, 16
      %311 = vsyncadd [#allocation4], %s310
      %s313 = sshll.u32 [#allocation3], 4
      %s314 = int_to_ptr.vmem [resolvable:$true] %s313
      %316 = dma.vmem_to_hbm [thread:$0]  %s314, 16, %s7, [#allocation4]
    $region33: #{tpu_custom_call.1} parent=1 // pred_fallthru
      _
    // Predicated region
    $region34: #{tpu_custom_call.1} parent=1 // pred_check
      _
    $region35: #{tpu_custom_call.1} parent=1 // pred_check_branch
      %318 = sbr.rel (0) target = $region37
    $region36: #{tpu_custom_call.1} parent=1 // pred_region
      %319 = dma.done [#allocation4], 16
    $region37: #{tpu_custom_call.1} parent=1 // pred_fallthru
      _
    %320 = vsyncpa [#allocation4], 1

</llo_original>
